<compile_context>
chip_gen: v7x
topology: tpu7x:2x2x1
jax: 0.10.0
libtpu: 0.0.40
codegen_flags: <defaults>
</compile_context>

<pallas_src>
import functools

import jax
import jax.numpy as jnp
import numpy as np
from jax.experimental import pallas as pl
from jax.experimental.pallas import tpu as pltpu


def transition_kernel(x_ref, sb_ref, w_ref, s_ref, o_ref, *, dot_dtype):
    # x_ref : (1, C, Lt)   NCHW activations, Lt flat pixels (whole rows) on lanes
    # sb_ref: (2, C, 1)    folded BN scale (row 0) and bias (row 1), f32
    # w_ref : (Cout, C)    1x1 conv weight with the 0.25 pool factor folded in
    # s_ref : (Lt, Q)      0/1 window-selection matrix (4 ones per column)
    # o_ref : (1, Cout, Q) lane-dense output tile, Q = Lt // 4 pooled pixels
    s = sb_ref[0]                                     # (C, 1) -> lane broadcast
    b = sb_ref[1]                                     # (C, 1)

    # BN + ReLU in f32 on the VPU (v5e has no bf16 VALU anyway).
    y = jnp.maximum(x_ref[0] * s + b, 0.0)            # (C, Lt)

    # 2x2 average pool as an MXU matmul with the static selection matrix
    # (0.25 folded into w_ref).  Lanes stay dense; no strided slices needed.
    pooled = jnp.dot(y.astype(dot_dtype), s_ref[...],
                     preferred_element_type=jnp.float32)          # (C, Q)

    # 1x1 convolution == channel matmul at pooled resolution.
    out = jnp.dot(w_ref[...], pooled.astype(dot_dtype),
                  preferred_element_type=jnp.float32)             # (Cout, Q)
    o_ref[0] = out.astype(o_ref.dtype)


def _pick_lane_tile(P, W, Ho, C, Cout, in_itemsize, dot_itemsize,
                    budget_bytes=16 * 1024 * 1024, max_lanes=1024):
    """Pick Lt (input lanes per block): whole 2-row groups, Lt | H*W.

    Chunked candidates additionally require Lt % 512 == 0 so the output tile
    (Lt // 4) is a multiple of 128 lanes (unmasked stores).  Falls back to the
    whole image, which is always a legal block (dims == full dims).
    """
    def block_bytes(lt):
        q = lt // 4
        return 2 * (C * lt * in_itemsize        # x block (double-buffered)
                    + lt * q * dot_itemsize     # selection matrix S
                    + Cout * C * dot_itemsize   # folded conv weight
                    + Cout * q * 4)             # output block

    valid = []
    for r in range(1, Ho):                      # r == Ho is the full-image case
        if Ho % r:
            continue
        lt = 2 * W * r                          # whole 2-row groups
        if lt >= P or lt % 512:
            continue
        if block_bytes(lt) > budget_bytes:
            continue
        valid.append(lt)
    capped = [lt for lt in valid if lt <= max_lanes]
    if capped:
        return max(capped)
    if valid:
        return min(valid)
    return P                                    # whole image per block


def transition_forward(x_nchw, gamma, beta, run_mean, run_var, conv_w, eps=1e-5):
    """Exact shape/dtype semantics of Transition.forward (eval-mode BN).

    x_nchw : (N, Cin, H, W)    conv_w : (Cout, Cin, 1, 1)
    returns: (N, Cout, H//2, W//2)
    """
    N, C, H, W = x_nchw.shape
    Cout = conv_w.shape[0]
    assert H % 2 == 0 and W % 2 == 0, "avg_pool2d(2): H and W must be even"
    Ho, Wo = H // 2, W // 2
    P = H * W

    # bf16 matmul operands for real channel widths (full-rate MXU, exact 0/1
    # selection matrix); f32 for tiny configs to keep tight tolerances.
    dot_dtype = jnp.bfloat16 if C >= 16 else jnp.float32
    dot_itemsize = jnp.dtype(dot_dtype).itemsize
    in_itemsize = jnp.dtype(x_nchw.dtype).itemsize

    Lt = _pick_lane_tile(P, W, Ho, C, Cout, in_itemsize, dot_itemsize)
    Q = Lt // 4                      # pooled pixels per block
    TH2 = Lt // W                    # input rows per block (even)
    n_chunks = P // Lt

    # Fold eval-mode BatchNorm into per-channel scale/bias (one tiny resident
    # VMEM input), kept f32.
    scale = gamma / jnp.sqrt(run_var + eps)
    bias = beta - run_mean * scale
    sb = jnp.stack([scale, bias], axis=0).reshape(2, C, 1).astype(jnp.float32)

    # 1x1 conv weight with the 2x2 avg-pool factor folded in: (Cout, Cin).
    wq = (conv_w.reshape(Cout, C) * 0.25).astype(dot_dtype)

    # Static window-selection matrix, identical for every block:
    #   lane p = rr*W + w  ->  output q = (rr//2)*Wo + (w//2)
    rr = jnp.arange(TH2)
    ww = jnp.arange(W)
    q_of_p = ((rr[:, None] // 2) * Wo + (ww[None, :] // 2)).reshape(Lt)
    sel = (q_of_p[:, None] == jnp.arange(Q)[None, :]).astype(dot_dtype)  # (Lt, Q)

    # NCHW -> (N, C, H*W): contiguous, FREE reshape — no pre-kernel HBM pass.
    x3 = x_nchw.reshape(N, C, P)

    kernel = functools.partial(transition_kernel, dot_dtype=dot_dtype)
    out = pl.pallas_call(
        kernel,
        out_shape=jax.ShapeDtypeStruct((N, Cout, Ho * Wo), x_nchw.dtype),
        grid_spec=pltpu.PrefetchScalarGridSpec(
            num_scalar_prefetch=0,
            grid=(N, n_chunks),
            in_specs=[
                pl.BlockSpec((1, C, Lt), lambda n, j: (n, 0, j)),
                pl.BlockSpec((2, C, 1), lambda n, j: (0, 0, 0)),
                pl.BlockSpec((Cout, C), lambda n, j: (0, 0)),
                pl.BlockSpec((Lt, Q), lambda n, j: (0, 0)),
            ],
            out_specs=pl.BlockSpec((1, Cout, Q), lambda n, j: (n, 0, j)),
        ),
        compiler_params=pltpu.CompilerParams(
            dimension_semantics=("parallel", "parallel"),
            vmem_limit_bytes=32 * 1024 * 1024),
    )(x3, sb, wq, sel)

    # (N, Cout, Ho*Wo) -> (N, Cout, Ho, Wo): contiguous split, FREE reshape.
    return out.reshape(N, Cout, Ho, Wo)


def transition_reference(x, gamma, beta, run_mean, run_var, conv_w, eps=1e-5):
    """Pure-JAX reference mirroring the PyTorch module (eval-mode BN)."""
    xn = (x - run_mean[None, :, None, None]) * jax.lax.rsqrt(
        run_var[None, :, None, None] + eps)
    y = jnp.maximum(xn * gamma[None, :, None, None] + beta[None, :, None, None], 0.0)
    w2 = conv_w.reshape(conv_w.shape[0], conv_w.shape[1])
    z = jnp.einsum("nchw,oc->nohw", y, w2)
    Nn, Co, H, W = z.shape
    return z.reshape(Nn, Co, H // 2, 2, W // 2, 2).mean(axis=(3, 5))


if __name__ == "__main__":
    # Module config: nChannels=4, nOutChannels=2; input (2, 4, 16, 16)
    N, Cin, H, W = 2, 4, 16, 16
    Cout = 2

    key = jax.random.PRNGKey(0)
    kx, kw, kg, kb, km, kv = jax.random.split(key, 6)

    x = jax.random.normal(kx, (N, Cin, H, W), dtype=jnp.float32)
    conv_w = jax.random.normal(kw, (Cout, Cin, 1, 1), dtype=jnp.float32) * 0.5
    gamma = 1.0 + 0.1 * jax.random.normal(kg, (Cin,), dtype=jnp.float32)
    beta = 0.1 * jax.random.normal(kb, (Cin,), dtype=jnp.float32)
    run_mean = 0.2 * jax.random.normal(km, (Cin,), dtype=jnp.float32)
    run_var = 0.5 + jnp.abs(jax.random.normal(kv, (Cin,), dtype=jnp.float32))

    out = transition_forward(x, gamma, beta, run_mean, run_var, conv_w)
    out = jax.block_until_ready(out)

    ref = transition_reference(x, gamma, beta, run_mean, run_var, conv_w)
    assert out.shape == (N, Cout, H // 2, W // 2), out.shape
    np.testing.assert_allclose(np.asarray(out), np.asarray(ref),
                               rtol=1e-5, atol=1e-5)
    print("KERNEL_OK")
</pallas_src>

<mosaic_0001>
module attributes {stable_mosaic.version = 11 : i64} {
  func.func @transition_kernel(%arg0: i32, %arg1: i32, %arg2: memref<1x4x256xf32, #tpu.memory_space<vmem>>, %arg3: memref<2x4x1xf32, #tpu.memory_space<vmem>>, %arg4: memref<2x4xf32, #tpu.memory_space<vmem>>, %arg5: memref<256x64xf32, #tpu.memory_space<vmem>>, %arg6: memref<1x2x64xf32, #tpu.memory_space<vmem>>) attributes {dimension_semantics = [#tpu.dimension_semantics<parallel>, #tpu.dimension_semantics<parallel>], iteration_bounds = array<i64: 2, 1>, scalar_prefetch = 0 : i64, scratch_operands = 0 : i64, tpu.core_type = #tpu.core_type<tc>, window_params = [{transform_indices = @transform_0, window_bounds = array<i64: 1, 4, 256>}, {pipeline_mode = #tpu.pipeline_mode<synchronous>, transform_indices = @transform_1, window_bounds = array<i64: 2, 4, 1>}, {pipeline_mode = #tpu.pipeline_mode<synchronous>, transform_indices = @transform_2, window_bounds = array<i64: 2, 4>}, {pipeline_mode = #tpu.pipeline_mode<synchronous>, transform_indices = @transform_3, window_bounds = array<i64: 256, 64>}, {transform_indices = @transform_4, window_bounds = array<i64: 1, 2, 64>}]} {
    %c0 = arith.constant 0 : index
    %c0_0 = arith.constant 0 : index
    %c0_1 = arith.constant 0 : index
    %0 = vector.load %arg3[%c0, %c0_0, %c0_1] : memref<2x4x1xf32, #tpu.memory_space<vmem>>, vector<1x4x1xf32>
    %1 = vector.shape_cast %0 : vector<1x4x1xf32> to vector<4x1xf32>
    %c1 = arith.constant 1 : index
    %c0_2 = arith.constant 0 : index
    %c0_3 = arith.constant 0 : index
    %2 = vector.load %arg3[%c1, %c0_2, %c0_3] : memref<2x4x1xf32, #tpu.memory_space<vmem>>, vector<1x4x1xf32>
    %3 = vector.shape_cast %2 : vector<1x4x1xf32> to vector<4x1xf32>
    %c0_4 = arith.constant 0 : index
    %c0_5 = arith.constant 0 : index
    %c0_6 = arith.constant 0 : index
    %4 = vector.load %arg2[%c0_4, %c0_5, %c0_6] : memref<1x4x256xf32, #tpu.memory_space<vmem>>, vector<1x4x256xf32>
    %5 = vector.shape_cast %4 : vector<1x4x256xf32> to vector<4x256xf32>
    %6 = vector.broadcast %1 : vector<4x1xf32> to vector<4x256xf32>
    %7 = arith.mulf %5, %6 : vector<4x256xf32>
    %8 = vector.broadcast %3 : vector<4x1xf32> to vector<4x256xf32>
    %9 = arith.addf %7, %8 : vector<4x256xf32>
    %cst = arith.constant 0.000000e+00 : f32
    %10 = vector.broadcast %cst : f32 to vector<4x256xf32>
    %11 = arith.maximumf %9, %10 : vector<4x256xf32>
    %c0_7 = arith.constant 0 : index
    %c0_8 = arith.constant 0 : index
    %12 = vector.load %arg5[%c0_7, %c0_8] : memref<256x64xf32, #tpu.memory_space<vmem>>, vector<256x64xf32>
    %cst_9 = arith.constant dense<0.000000e+00> : vector<4x64xf32>
    %13 = tpu.matmul %11, %12, %cst_9 {dimension_numbers = #tpu.dot_dimension_numbers<[1], [0], [0], [1], [0, 0, 1, 1], [], []>} : vector<4x256xf32>, vector<256x64xf32>, vector<4x64xf32> -> vector<4x64xf32>
    %c0_10 = arith.constant 0 : index
    %c0_11 = arith.constant 0 : index
    %14 = vector.load %arg4[%c0_10, %c0_11] : memref<2x4xf32, #tpu.memory_space<vmem>>, vector<2x4xf32>
    %cst_12 = arith.constant dense<0.000000e+00> : vector<2x64xf32>
    %15 = tpu.matmul %14, %13, %cst_12 {dimension_numbers = #tpu.dot_dimension_numbers<[1], [0], [0], [1], [0, 0, 1, 1], [], []>} : vector<2x4xf32>, vector<4x64xf32>, vector<2x64xf32> -> vector<2x64xf32>
    %c0_13 = arith.constant 0 : index
    %c0_14 = arith.constant 0 : index
    %c0_15 = arith.constant 0 : index
    %16 = vector.load %arg6[%c0_13, %c0_14, %c0_15] : memref<1x2x64xf32, #tpu.memory_space<vmem>>, vector<1x2x64xf32>
    %17 = vector.shape_cast %16 : vector<1x2x64xf32> to vector<2x64xf32>
    %18 = vector.shape_cast %15 : vector<2x64xf32> to vector<1x2x64xf32>
    tpu.vector_store %arg6[%c0_13, %c0_14, %c0_15], %18 {strides = array<i32>} : memref<1x2x64xf32, #tpu.memory_space<vmem>>, vector<1x2x64xf32>,
    return
  }
  func.func @transform_0(%arg0: i32, %arg1: i32) -> (i32, i32, i32) {
    %c0_i32 = arith.constant 0 : i32
    %c0_i32_0 = arith.constant 0 : i32
    return %arg0, %c0_i32, %arg1 : i32, i32, i32
  }
  func.func @transform_1(%arg0: i32, %arg1: i32) -> (i32, i32, i32) {
    %c0_i32 = arith.constant 0 : i32
    %c0_i32_0 = arith.constant 0 : i32
    %c0_i32_1 = arith.constant 0 : i32
    %c0_i32_2 = arith.constant 0 : i32
    return %c0_i32, %c0_i32_0, %c0_i32_1 : i32, i32, i32
  }
  func.func @transform_2(%arg0: i32, %arg1: i32) -> (i32, i32) {
    %c0_i32 = arith.constant 0 : i32
    %c0_i32_0 = arith.constant 0 : i32
    %c0_i32_1 = arith.constant 0 : i32
    return %c0_i32, %c0_i32_0 : i32, i32
  }
  func.func @transform_3(%arg0: i32, %arg1: i32) -> (i32, i32) {
    %c0_i32 = arith.constant 0 : i32
    %c0_i32_0 = arith.constant 0 : i32
    %c0_i32_1 = arith.constant 0 : i32
    return %c0_i32, %c0_i32_0 : i32, i32
  }
  func.func @transform_4(%arg0: i32, %arg1: i32) -> (i32, i32, i32) {
    %c0_i32 = arith.constant 0 : i32
    %c0_i32_0 = arith.constant 0 : i32
    return %arg0, %c0_i32, %arg1 : i32, i32, i32
  }
}

</mosaic_0001>

<llo_original>
// kernel: tpu_custom_call.1
$region0: #{tpu_custom_call.1}
  #allocation0 [shape = 'u32[]', space=smem, size = 0x4, offset = 0x4, fixed_abs, tag = 'smem constant byte address 0x4 - core index']
  #allocation1 [shape = 'u32[144,128]{1,0:T(1,128)}', space=vmem, size = 0x12000, scoped, tag = 'internal scratch']
  %s0 = inlined_call_operand.vmem [shape: f32[2,4,256], index: 0, kind: input, shape index: {}]
  %s1 = inlined_call_operand.vmem [shape: f32[2,4,1], index: 1, kind: input, shape index: {}]
  %s2 = inlined_call_operand.vmem [shape: f32[2,4], index: 2, kind: input, shape index: {}]
  %s3 = inlined_call_operand.vmem [shape: f32[256,64], index: 3, kind: input, shape index: {}]
  %s4 = inlined_call_operand.hbm [shape: f32[2,2,64], index: 4, kind: output, shape index: {}]
  %s5 = sld [smem:[#allocation0]]
  $region49: #{tpu_custom_call.1} parent=0
    _
  %s7 = ssub.s32 1, %s5
  %s8 = scalar_select 0, %s7, %s5
  $region1: #{tpu_custom_call.1} parent=0
    #allocation2 [shape = 'u8[2048]{0}', space=vmem, size = 0x800, scoped, tag = 'output window, operand 0']
    #allocation3 [shape = 's32[2]{0}', space=sflag, size = 0x8, scoped, tag = 'scoped memory for tpu_custom_call.1']
    %9 = vsyncpa [#allocation3], 0
    %s10 = scalar_lea.sflag [#allocation3], 1
    %11 = vsyncpa %s10, 0
    loop: start=0, step=1, limit=4
    $region2: #{tpu_custom_call.1} parent=1 // loop_pre_header
      _
    $region3: #{tpu_custom_call.1} parent=1 // loop_header
      %s13 = sphi 0, %s17
      %p14 = scmp.ge.s32.totalorder %s13, 4
      %s20 = sphi 0, %s32
      %s21 = sphi 0, %s28
      %s22 = sphi 0, %s20
      %s23 = sphi 0, %s21
      %s24 = sphi 0, %s22
      %s25 = sphi 0, %s23
      %s37 = sphi 0, %s39
      %s40 = sphi 0, %s37
      %s41 = sphi 0, %s40
      %s57 = sphi 0, %s41
      %s61 = sphi 0, %s61
      %s63 = sphi 0, %s61
      %s64 = sphi 0, %s63
      %s78 = sphi 0, %s64
      %s82 = sphi 0, %s82
      %s84 = sphi 0, %s82
      %s85 = sphi 0, %s84
      %s99 = sphi 0, %s85
      %s103 = sphi 0, %s103
      %s105 = sphi 0, %s103
      %s106 = sphi 0, %s105
      %s120 = sphi 0, %s106
      %s128 = sphi 0, %s130
      %s131 = sphi 0, %s128
      %s132 = sphi 0, %s131
      %s148 = sphi 0, %s132
    $region4: #{tpu_custom_call.1} parent=1 // loop_header_branch
      %16 = sbr.rel (%p14) target = $region8
    $region5: #{tpu_custom_call.1} parent=1 // loop_body
      %s18 = ssub.s32 %s13, 1
      %s19 = ssub.s32 %s13, 2
      %s26 = sadd.s32 1, %s21
      %p27 = scmp.ge.s32.totalorder %s26, 1
      %s28 = scalar_select %p27, 0, %s26
      %s29 = sadd.s32 1, %s20
      %s30 = scalar_select %p27, %s29, %s20
      %p31 = scmp.ge.s32.totalorder %s30, 2
      %s32 = scalar_select %p31, 0, %s30
      %s33 = ssub.s32 %s20, %s32
      %s34 = ssub.s32 %s21, %s28
      %s35 = sor.u32 %s33, %s34
      %p36 = scmp.eq.s32.totalorder %s35, 0
      %s38 = sadd.s32 %s37, 1
      %s39 = scalar_select %p36, %s37, %s38
      %p42 = pneg %p36
      %p43 = scmp.eq.s32.totalorder %s13, 1
      %p44 = por %p42, %p43
      %p45 = scmp.ne.s32.totalorder %s37, %s40
      %p46 = scmp.eq.s32.totalorder %s13, 0
      %p47 = por %p45, %p46
      %p48 = scmp.ne.s32.totalorder %s37, %s40
      %p49 = scmp.eq.s32.totalorder %s18, 1
      %p50 = por %p48, %p49
      %p51 = scmp.ne.s32.totalorder %s40, %s41
      %p52 = scmp.eq.s32.totalorder %s18, 0
      %p53 = por %p51, %p52
      %p54 = scmp.ne.s32.totalorder %s40, %s41
      %p55 = scmp.eq.s32.totalorder %s19, 1
      %p56 = por %p54, %p55
      %p58 = scmp.ne.s32.totalorder %s41, %s57
      %p59 = scmp.eq.s32.totalorder %s19, 0
      %p60 = por %p58, %p59
      %s62 = sadd.s32 %s61, 1
      %p65 = scmp.eq.s32.totalorder %s13, 1
      %p66 = scmp.ne.s32.totalorder %s61, %s63
      %p67 = scmp.eq.s32.totalorder %s13, 0
      %p68 = por %p66, %p67
      %p69 = scmp.ne.s32.totalorder %s61, %s63
      %p70 = scmp.eq.s32.totalorder %s18, 1
      %p71 = por %p69, %p70
      %p72 = scmp.ne.s32.totalorder %s63, %s64
      %p73 = scmp.eq.s32.totalorder %s18, 0
      %p74 = por %p72, %p73
      %p75 = scmp.ne.s32.totalorder %s63, %s64
      %p76 = scmp.eq.s32.totalorder %s19, 1
      %p77 = por %p75, %p76
      %p79 = scmp.ne.s32.totalorder %s64, %s78
      %p80 = scmp.eq.s32.totalorder %s19, 0
      %p81 = por %p79, %p80
      %s83 = sadd.s32 %s82, 1
      %p86 = scmp.eq.s32.totalorder %s13, 1
      %p87 = scmp.ne.s32.totalorder %s82, %s84
      %p88 = scmp.eq.s32.totalorder %s13, 0
      %p89 = por %p87, %p88
      %p90 = scmp.ne.s32.totalorder %s82, %s84
      %p91 = scmp.eq.s32.totalorder %s18, 1
      %p92 = por %p90, %p91
      %p93 = scmp.ne.s32.totalorder %s84, %s85
      %p94 = scmp.eq.s32.totalorder %s18, 0
      %p95 = por %p93, %p94
      %p96 = scmp.ne.s32.totalorder %s84, %s85
      %p97 = scmp.eq.s32.totalorder %s19, 1
      %p98 = por %p96, %p97
      %p100 = scmp.ne.s32.totalorder %s85, %s99
      %p101 = scmp.eq.s32.totalorder %s19, 0
      %p102 = por %p100, %p101
      %s104 = sadd.s32 %s103, 1
      %p107 = scmp.eq.s32.totalorder %s13, 1
      %p108 = scmp.ne.s32.totalorder %s103, %s105
      %p109 = scmp.eq.s32.totalorder %s13, 0
      %p110 = por %p108, %p109
      %p111 = scmp.ne.s32.totalorder %s103, %s105
      %p112 = scmp.eq.s32.totalorder %s18, 1
      %p113 = por %p111, %p112
      %p114 = scmp.ne.s32.totalorder %s105, %s106
      %p115 = scmp.eq.s32.totalorder %s18, 0
      %p116 = por %p114, %p115
      %p117 = scmp.ne.s32.totalorder %s105, %s106
      %p118 = scmp.eq.s32.totalorder %s19, 1
      %p119 = por %p117, %p118
      %p121 = scmp.ne.s32.totalorder %s106, %s120
      %p122 = scmp.eq.s32.totalorder %s19, 0
      %p123 = por %p121, %p122
      %s124 = ssub.s32 %s20, %s32
      %s125 = ssub.s32 %s21, %s28
      %s126 = sor.u32 %s124, %s125
      %p127 = scmp.eq.s32.totalorder %s126, 0
      %s129 = sadd.s32 %s128, 1
      %s130 = scalar_select %p127, %s128, %s129
      %p133 = pneg %p127
      %p134 = scmp.eq.s32.totalorder %s13, 1
      %p135 = por %p133, %p134
      %p136 = scmp.ne.s32.totalorder %s128, %s131
      %p137 = scmp.eq.s32.totalorder %s13, 0
      %p138 = por %p136, %p137
      %p139 = scmp.ne.s32.totalorder %s128, %s131
      %p140 = scmp.eq.s32.totalorder %s18, 1
      %p141 = por %p139, %p140
      %p142 = scmp.ne.s32.totalorder %s131, %s132
      %p143 = scmp.eq.s32.totalorder %s18, 0
      %p144 = por %p142, %p143
      %p145 = scmp.ne.s32.totalorder %s131, %s132
      %p146 = scmp.eq.s32.totalorder %s19, 1
      %p147 = por %p145, %p146
      %p149 = scmp.ne.s32.totalorder %s132, %s148
      %p150 = scmp.eq.s32.totalorder %s19, 0
      %p151 = por %p149, %p150
      %p152 = scmp.le.s32.totalorder 1, %s13
      %p153 = scmp.lt.s32.totalorder %s13, 3
      %p154 = pnand %p152, %p153
      %p155 = pneg %p154
      // Predicated region
      $region9: #{tpu_custom_call.1} parent=5 // pred_check
        _
      $region10: #{tpu_custom_call.1} parent=5 // pred_check_branch
        %157 = sbr.rel (%p154) target = $region12
      $region11: #{tpu_custom_call.1} parent=5 // pred_region
        %s158 = ssub.s32 %s13, 1
        // Predicated region
        $region13: #{tpu_custom_call.1} parent=11 // pred_check
          %p159 = pneg %p74
        $region14: #{tpu_custom_call.1} parent=11 // pred_check_branch
          %161 = sbr.rel (%p159) target = $region16
        $region15: #{tpu_custom_call.1} parent=11 // pred_region
          _
        $region16: #{tpu_custom_call.1} parent=11 // pred_fallthru
          _
        // Predicated region
        $region17: #{tpu_custom_call.1} parent=11 // pred_check
          %p162 = pneg %p95
        $region18: #{tpu_custom_call.1} parent=11 // pred_check_branch
          %164 = sbr.rel (%p162) target = $region20
        $region19: #{tpu_custom_call.1} parent=11 // pred_region
          _
        $region20: #{tpu_custom_call.1} parent=11 // pred_fallthru
          _
        // Predicated region
        $region21: #{tpu_custom_call.1} parent=11 // pred_check
          %p165 = pneg %p116
        $region22: #{tpu_custom_call.1} parent=11 // pred_check_branch
          %167 = sbr.rel (%p165) target = $region24
        $region23: #{tpu_custom_call.1} parent=11 // pred_region
          _
        $region24: #{tpu_custom_call.1} parent=11 // pred_fallthru
          _
      $region12: #{tpu_custom_call.1} parent=5 // pred_fallthru
        _
      %p168 = scmp.lt.s32.totalorder %s13, 2
      // Predicated region
      $region25: #{tpu_custom_call.1} parent=5 // pred_check
        %p169 = pneg %p168
      $region26: #{tpu_custom_call.1} parent=5 // pred_check_branch
        %171 = sbr.rel (%p169) target = $region28
      $region27: #{tpu_custom_call.1} parent=5 // pred_region
        // Predicated region
        $region29: #{tpu_custom_call.1} parent=27 // pred_check
          %p172 = pneg %p47
        $region30: #{tpu_custom_call.1} parent=27 // pred_check_branch
          %174 = sbr.rel (%p172) target = $region32
        $region31: #{tpu_custom_call.1} parent=27 // pred_region
          %s175 = smul.u32 2, %s21
          %p176 = scmp.lt.s32.totalorder %s20, 1
          %s177 = scalar_select %p176, %s20, 1
          %p178 = scmp.lt.s32.totalorder %s175, 1
          %s179 = scalar_select %p178, %s175, 1
          %s180 = smul.addr %s177, 2
          %s181 = sadd.s32 %s179, %s180
          %s182 = smul.addr %s181, 4
          %s183 = scalar_lea.vmem %s0, %s182
          %s184 = smul.u32 2, %s21
        $region32: #{tpu_custom_call.1} parent=27 // pred_fallthru
          _
      $region28: #{tpu_custom_call.1} parent=5 // pred_fallthru
        _
      %p185 = scmp.le.s32.totalorder 1, %s13
      %p186 = scmp.lt.s32.totalorder %s13, 3
      %p187 = pnand %p185, %p186
      %p188 = pneg %p187
      // Predicated region
      $region33: #{tpu_custom_call.1} parent=5 // pred_check
        _
      $region34: #{tpu_custom_call.1} parent=5 // pred_check_branch
        %190 = sbr.rel (%p187) target = $region36
      $region35: #{tpu_custom_call.1} parent=5 // pred_region
        %s191 = ssub.s32 %s13, 1
        %s192 = smul.u32 2, %s23
        %p193 = scmp.lt.s32.totalorder %s22, 1
        %s194 = scalar_select %p193, %s22, 1
        %p195 = scmp.lt.s32.totalorder %s192, 1
        %s196 = scalar_select %p195, %s192, 1
        %s197 = smul.addr %s194, 2
        %s198 = sadd.s32 %s196, %s197
        %s199 = smul.addr %s198, 4
        %s200 = scalar_lea.vmem %s0, %s199
        %p201 = pneg %p53
        %p202 = pneg %p50
        %p203 = pneg %p74
        %p204 = pneg %p71
        %p205 = pneg %p95
        %p206 = pneg %p92
        %p207 = pneg %p116
        %p208 = pneg %p113
        %p209 = pneg %p144
        %p210 = pneg %p141
        %s211 = sand.u32 %s131, 1
        %s212 = scalar_lea.sflag [#allocation3], %s211
        %s213 = sand.u32 %s131, 1
        %s214 = smul.addr %s213, 2
        %s215 = scalar_lea.vmem [#allocation2], %s214
        %s216 = smul.u32 2, %s23
        %p217 = scmp.lt.s32.totalorder %s22, 1
        %s218 = scalar_select %p217, %s22, 1
        %p219 = scmp.lt.s32.totalorder %s216, 1
        %s220 = scalar_select %p219, %s216, 1
        %s221 = smul.addr %s218, 2
        %s222 = sadd.s32 %s220, %s221
        %s223 = smul.addr %s222, 4
        %s224 = scalar_lea.vmem %s0, %s223
        %s225 = smul.u32 2, %s23
        %v226 = vld [vmem:[%s1] sm:$0xf]
        %s227 = scalar_lea.vmem %s1, 4
        %v228 = vld [vmem:[%s227] sm:$0xf]
        %v229 = vld [vmem:[%s224] sm:$0xff]
        %231 = vset.pattern.permute.xlu0 0
        %232 = vperm.xlu0 %231, %v226
        %v233 = vpop.permute.xlu0 %232
        %v235 = vunpack.c.l.s4 839922192
        %v236 = vunpack.c.0.s8 %v235
        %v237 = vlaneseq
        %v238 = vshrl.u32 %v237, 7
        %v239 = vsub.s32 %v236, %v238
        %v240 = vrot.slane %v233, %v239
        %v242 = vmul.f32 %v229, %v240
        %244 = vset.pattern.permute.xlu0 0
        %245 = vperm.xlu0 %244, %v228
        %v246 = vpop.permute.xlu0 %245
        %v248 = vunpack.c.l.s4 839922192
        %v249 = vunpack.c.0.s8 %v248
        %v250 = vlaneseq
        %v251 = vshrl.u32 %v250, 7
        %v252 = vsub.s32 %v249, %v251
        %v253 = vrot.slane %v246, %v252
        %v255 = vadd.f32 %v242, %v253
        %v256 = vmax.f32 %v255, 0.0
        %v257 = vld [vmem:[%s3] sm:$0xff]
        %v258 = vld [vmem:[%s3 + $0x8] sm:$0xff]
        %v259 = vld [vmem:[%s3 + $0x10] sm:$0xff]
        %v260 = vld [vmem:[%s3 + $0x18] sm:$0xff]
        %v261 = vld [vmem:[%s3 + $0x20] sm:$0xff]
        %v262 = vld [vmem:[%s3 + $0x28] sm:$0xff]
        %v263 = vld [vmem:[%s3 + $0x30] sm:$0xff]
        %v264 = vld [vmem:[%s3 + $0x38] sm:$0xff]
        %v265 = vld [vmem:[%s3 + $0x40] sm:$0xff]
        %v266 = vld [vmem:[%s3 + $0x48] sm:$0xff]
        %v267 = vld [vmem:[%s3 + $0x50] sm:$0xff]
        %v268 = vld [vmem:[%s3 + $0x58] sm:$0xff]
        %v269 = vld [vmem:[%s3 + $0x60] sm:$0xff]
        %v270 = vld [vmem:[%s3 + $0x68] sm:$0xff]
        %v271 = vld [vmem:[%s3 + $0x70] sm:$0xff]
        %v272 = vld [vmem:[%s3 + $0x78] sm:$0xff]
        %v273 = vld [vmem:[%s3 + $0x80] sm:$0xff]
        %v274 = vld [vmem:[%s3 + $0x88] sm:$0xff]
        %v275 = vld [vmem:[%s3 + $0x90] sm:$0xff]
        %v276 = vld [vmem:[%s3 + $0x98] sm:$0xff]
        %v277 = vld [vmem:[%s3 + $0xa0] sm:$0xff]
        %v278 = vld [vmem:[%s3 + $0xa8] sm:$0xff]
        %v279 = vld [vmem:[%s3 + $0xb0] sm:$0xff]
        %v280 = vld [vmem:[%s3 + $0xb8] sm:$0xff]
        %v281 = vld [vmem:[%s3 + $0xc0] sm:$0xff]
        %v282 = vld [vmem:[%s3 + $0xc8] sm:$0xff]
        %v283 = vld [vmem:[%s3 + $0xd0] sm:$0xff]
        %v284 = vld [vmem:[%s3 + $0xd8] sm:$0xff]
        %v285 = vld [vmem:[%s3 + $0xe0] sm:$0xff]
        %v286 = vld [vmem:[%s3 + $0xe8] sm:$0xff]
        %v287 = vld [vmem:[%s3 + $0xf0] sm:$0xff]
        %v288 = vld [vmem:[%s3 + $0xf8] sm:$0xff]
        %v290 = vcombine.high %v256, %v256
        %292 = vmatprep.subr.mxu0 0.0
        %293 = vmatpush1.msra.mxu0 %v257
        %294 = vmatprep.subr.mxu0 0.0
        %295 = vmatpush1.msra.mxu0 %v258
        %296 = vmatprep.subr.mxu0 0.0
        %297 = vmatpush1.msra.mxu0 %v259
        %298 = vmatprep.subr.mxu0 0.0
        %299 = vmatpush1.msra.mxu0 %v260
        %300 = vmatprep.subr.mxu0 0.0
        %301 = vmatpush1.msra.mxu0 %v261
        %302 = vmatprep.subr.mxu0 0.0
        %303 = vmatpush1.msra.mxu0 %v262
        %304 = vmatprep.subr.mxu0 0.0
        %305 = vmatpush1.msra.mxu0 %v263
        %306 = vmatprep.subr.mxu0 0.0
        %307 = vmatpush1.msra.mxu0 %v264
        %308 = vmatprep.subr.mxu0 0.0
        %309 = vmatpush1.msra.mxu0 %v265
        %310 = vmatprep.subr.mxu0 0.0
        %311 = vmatpush1.msra.mxu0 %v266
        %312 = vmatprep.subr.mxu0 0.0
        %313 = vmatpush1.msra.mxu0 %v267
        %314 = vmatprep.subr.mxu0 0.0
        %315 = vmatpush1.msra.mxu0 %v268
        %316 = vmatprep.subr.mxu0 0.0
        %317 = vmatpush1.msra.mxu0 %v269
        %318 = vmatprep.subr.mxu0 0.0
        %319 = vmatpush1.msra.mxu0 %v270
        %320 = vmatprep.subr.mxu0 0.0
        %321 = vmatpush1.msra.mxu0 %v271
        %322 = vmatprep.subr.mxu0 0.0
        %323 = vmatpush1.msra.mxu0 %v272
        %324 = vmatprep.subr.mxu0 0.0
        %325 = vmatpush1.msra.mxu0 %v273
        %326 = vmatprep.subr.mxu0 0.0
        %327 = vmatpush1.msra.mxu0 %v274
        %328 = vmatprep.subr.mxu0 0.0
        %329 = vmatpush1.msra.mxu0 %v275
        %330 = vmatprep.subr.mxu0 0.0
        %331 = vmatpush1.msra.mxu0 %v276
        %332 = vmatprep.subr.mxu0 0.0
        %333 = vmatpush1.msra.mxu0 %v277
        %334 = vmatprep.subr.mxu0 0.0
        %335 = vmatpush1.msra.mxu0 %v278
        %336 = vmatprep.subr.mxu0 0.0
        %337 = vmatpush1.msra.mxu0 %v279
        %338 = vmatprep.subr.mxu0 0.0
        %339 = vmatpush1.msra.mxu0 %v280
        %340 = vmatprep.subr.mxu0 0.0
        %341 = vmatpush1.msra.mxu0 %v281
        %342 = vmatprep.subr.mxu0 0.0
        %343 = vmatpush1.msra.mxu0 %v282
        %344 = vmatprep.subr.mxu0 0.0
        %345 = vmatpush1.msra.mxu0 %v283
        %346 = vmatprep.subr.mxu0 0.0
        %347 = vmatpush1.msra.mxu0 %v284
        %348 = vmatprep.subr.mxu0 0.0
        %349 = vmatpush1.msra.mxu0 %v285
        %350 = vmatprep.subr.mxu0 0.0
        %351 = vmatpush1.msra.mxu0 %v286
        %352 = vmatprep.subr.mxu0 0.0
        %353 = vmatpush1.msra.mxu0 %v287
        %354 = vmatprep.subr.mxu0 0.0
        %355 = vmatpush1.msra.mxu0 %v288
        %356 = vmatprep.mubr.f32.mxu0 %v290
        %357 = vmatmul.mubr.f32.gmra.mrb[0].mxu0 %v256
        %v358 = vpop.f32.mrb[0].mxu0
        %v359 = vadd.f32 0.0, %v358
        %v360 = vpop.f32.mrb[0].mxu0
        %361 = vdwg.mxu0
        %v362 = vld [vmem:[%s2] sm:$0x3]
        %vm363 = vcmask 31744
        %v365 = vsel %vm363, %v362, 0
        %vm367 = vcmask 1043456
        %v369 = vsel %vm367, %v359, 0
        %371 = vmatprep.subr.mxu0 0.0
        %372 = vmatpush1.msra.mxu0 %v369
        %373 = vmatprep.subr.mxu0 0.0
        %374 = vmatpush1.msra.mxu0 0.0
        %375 = vmatprep.subr.mxu0 0.0
        %376 = vmatpush1.msra.mxu0 0.0
        %377 = vmatprep.subr.mxu0 0.0
        %378 = vmatpush1.msra.mxu0 0.0
        %379 = vmatprep.subr.mxu0 0.0
        %380 = vmatpush1.msra.mxu0 0.0
        %381 = vmatprep.subr.mxu0 0.0
        %382 = vmatpush1.msra.mxu0 0.0
        %383 = vmatprep.subr.mxu0 0.0
        %384 = vmatpush1.msra.mxu0 0.0
        %385 = vmatprep.subr.mxu0 0.0
        %386 = vmatpush1.msra.mxu0 0.0
        %387 = vmatprep.subr.mxu0 0.0
        %388 = vmatpush1.msra.mxu0 0.0
        %389 = vmatprep.subr.mxu0 0.0
        %390 = vmatpush1.msra.mxu0 0.0
        %391 = vmatprep.subr.mxu0 0.0
        %392 = vmatpush1.msra.mxu0 0.0
        %393 = vmatprep.subr.mxu0 0.0
        %394 = vmatpush1.msra.mxu0 0.0
        %395 = vmatprep.subr.mxu0 0.0
        %396 = vmatpush1.msra.mxu0 0.0
        %397 = vmatprep.subr.mxu0 0.0
        %398 = vmatpush1.msra.mxu0 0.0
        %399 = vmatprep.subr.mxu0 0.0
        %400 = vmatpush1.msra.mxu0 0.0
        %401 = vmatprep.subr.mxu0 0.0
        %402 = vmatpush1.msra.mxu0 0.0
        %403 = vmatprep.subr.mxu0 0.0
        %404 = vmatpush1.msra.mxu0 0.0
        %405 = vmatprep.subr.mxu0 0.0
        %406 = vmatpush1.msra.mxu0 0.0
        %407 = vmatprep.subr.mxu0 0.0
        %408 = vmatpush1.msra.mxu0 0.0
        %409 = vmatprep.subr.mxu0 0.0
        %410 = vmatpush1.msra.mxu0 0.0
        %411 = vmatprep.subr.mxu0 0.0
        %412 = vmatpush1.msra.mxu0 0.0
        %413 = vmatprep.subr.mxu0 0.0
        %414 = vmatpush1.msra.mxu0 0.0
        %415 = vmatprep.subr.mxu0 0.0
        %416 = vmatpush1.msra.mxu0 0.0
        %417 = vmatprep.subr.mxu0 0.0
        %418 = vmatpush1.msra.mxu0 0.0
        %419 = vmatprep.subr.mxu0 0.0
        %420 = vmatpush1.msra.mxu0 0.0
        %421 = vmatprep.subr.mxu0 0.0
        %422 = vmatpush1.msra.mxu0 0.0
        %423 = vmatprep.subr.mxu0 0.0
        %424 = vmatpush1.msra.mxu0 0.0
        %425 = vmatprep.subr.mxu0 0.0
        %426 = vmatpush1.msra.mxu0 0.0
        %427 = vmatprep.subr.mxu0 0.0
        %428 = vmatpush1.msra.mxu0 0.0
        %429 = vmatprep.subr.mxu0 0.0
        %430 = vmatpush1.msra.mxu0 0.0
        %431 = vmatprep.subr.mxu0 0.0
        %432 = vmatpush1.msra.mxu0 0.0
        %433 = vmatprep.subr.mxu0 0.0
        %434 = vmatpush1.msra.mxu0 0.0
        %435 = vmatprep.mubr.f32.mxu0 0.0
        %436 = vmatmul.mubr.f32.gmra.mrb[0].mxu0 %v365
        %v437 = vpop.f32.mrb[0].mxu0
        %v438 = vadd.f32 0.0, %v437
        %v439 = vpop.f32.mrb[0].mxu0
        %440 = vdwg.mxu0
        %vm441 = vcmask 517120
        %442 = vst.msk [vmem:[%s215] sm:$0x3] %vm441, %v438
        %s443 = sand.u32 %s131, 1
        %s444 = scalar_lea.sflag [#allocation3], %s443
        %s445 = sand.u32 %s131, 1
        %s446 = smul.addr %s445, 2
        %s447 = scalar_lea.vmem [#allocation2], %s446
        // Predicated region
        $region37: #{tpu_custom_call.1} parent=35 // pred_check
          %p448 = pneg %p141
        $region38: #{tpu_custom_call.1} parent=35 // pred_check_branch
          %450 = sbr.rel (%p448) target = $region40
        $region39: #{tpu_custom_call.1} parent=35 // pred_region
          %s452 = ssub.s32 32, 32
          %453 = vsyncadd %s444, %s452
          %s454 = sadd.s32 %s23, %s22
          %s455 = smul.addr %s454, 32
          %s456 = scalar_lea.hbm %s4, %s455
          %s458 = sshll.u32 %s447, 4
          %s459 = int_to_ptr.vmem [resolvable:$true] %s458
          %461 = dma.vmem_to_hbm [thread:$0]  %s459, 32, %s456, %s444
        $region40: #{tpu_custom_call.1} parent=35 // pred_fallthru
          _
      $region36: #{tpu_custom_call.1} parent=5 // pred_fallthru
        _
      %p462 = scmp.le.s32.totalorder 2, %s13
      // Predicated region
      $region41: #{tpu_custom_call.1} parent=5 // pred_check
        %p463 = pneg %p462
      $region42: #{tpu_custom_call.1} parent=5 // pred_check_branch
        %465 = sbr.rel (%p463) target = $region44
      $region43: #{tpu_custom_call.1} parent=5 // pred_region
        %s466 = ssub.s32 %s13, 2
        // Predicated region
        $region45: #{tpu_custom_call.1} parent=43 // pred_check
          %p467 = pneg %p147
        $region46: #{tpu_custom_call.1} parent=43 // pred_check_branch
          %469 = sbr.rel (%p467) target = $region48
        $region47: #{tpu_custom_call.1} parent=43 // pred_region
          %s470 = sand.u32 %s132, 1
          %s471 = scalar_lea.sflag [#allocation3], %s470
          %s472 = sand.u32 %s132, 1
          %s473 = smul.addr %s472, 2
          %s474 = scalar_lea.vmem [#allocation2], %s473
          %475 = dma.done %s471, 32
        $region48: #{tpu_custom_call.1} parent=43 // pred_fallthru
          _
      $region44: #{tpu_custom_call.1} parent=5 // pred_fallthru
        _
    $region6: #{tpu_custom_call.1} parent=1 // loop_footer
      %s17 = sadd.s32 1, %s13
    $region7: #{tpu_custom_call.1} parent=1 // loop_footer_branch
      %12 = sbr.rel target = $region3
    $region8: #{tpu_custom_call.1} parent=1 // loop_exit
      _
    %476 = vsyncpa [#allocation3], 1
    %s477 = scalar_lea.sflag [#allocation3], 1
    %478 = vsyncpa %s477, 1

</llo_original>
